<compile_context>
chip_gen: v6e
topology: v6e:2x2x1
jax: 0.10.0
libtpu: 0.0.40
codegen_flags: <defaults>
</compile_context>

<pallas_src>
import jax
import jax.numpy as jnp
from jax import lax
from jax.experimental import pallas as pl
from jax.experimental.pallas import tpu as pltpu


def _round_up(x, m):
    return ((x + m - 1) // m) * m


def _make_mlp_kernel(num_layers, lane_dense_out):
    """Kernel over one row tile: x = x_i*x_j -> [Linear+ReLU]*(L-1) -> Linear -> sigmoid."""

    def kernel(*refs):
        xi_ref, xj_ref = refs[0], refs[1]
        o_ref = refs[-1]
        wb = refs[2:-1]  # alternating (w, b) per layer

        # Inputs may be bf16 (halved HBM traffic); upcast immediately after
        # load (v5e has no bf16 VPU) — all compute stays f32.
        x = xi_ref[...].astype(jnp.float32) * xj_ref[...].astype(jnp.float32)

        # Hidden layers: MXU matmul + bias + ReLU (dropout = identity, eval mode).
        for layer in range(num_layers - 1):
            w = wb[2 * layer][...]
            b = wb[2 * layer + 1][...]
            x = jnp.dot(x, w, preferred_element_type=jnp.float32) + b
            x = jnp.maximum(x, 0.0)
            # TODO(synk): training-mode dropout mask via pltpu.prng_random_bits.

        b_last = wb[-1][...]  # (1, out_dim)

        if lane_dense_out:
            # out_dim == 1.  The last weight is pre-transposed in the wrapper
            # to a lane-dense (1, hid) row; contract hid with x's lane axis
            # (NT dot_general, same dimension_numbers as flash-attention
            # q@k^T) so the logits land directly as a lane-major
            # (1, row_tile) row: no full-activation transpose and no 1-lane
            # masked stores.
            w_row = wb[-2][...]                                   # (1, hid_prev)
            logits = lax.dot_general(
                w_row, x, (((1,), (1,)), ((), ())),
                preferred_element_type=jnp.float32)               # (1, row_tile)
            o_ref[...] = jax.nn.sigmoid(logits + b_last)          # b_last is (1, 1)
        else:
            w_last = wb[-2][...]                                  # (hid_prev, out_dim)
            y = jnp.dot(x, w_last, preferred_element_type=jnp.float32) + b_last
            o_ref[...] = jax.nn.sigmoid(y)

    return kernel


def link_predictor_forward(x_i, x_j, params, *, row_tile=2048, lane_major_output=False):
    """params: list of (W [in, out], b [1, out]) per layer.

    Returns (N, out_dim) f32 (PyTorch-compatible).  If `lane_major_output` and
    out_dim == 1, returns the raw (1, N) lane-major logits row instead,
    skipping the tiny post-kernel relayout (use when the consumer can take it).
    """
    n, in_dim = x_i.shape
    assert x_j.shape == (n, in_dim), "x_i / x_j shape mismatch"
    num_layers = len(params)
    out_dim = params[-1][0].shape[1]
    lane_dense_out = (out_dim == 1)

    # Row tile: multiple of 128; cap so the grid has >= 2 tiles when n >= 256
    # (keeps both v7x TensorCores busy) and never exceeds the (rounded) batch.
    row_tile = max(128, (row_tile // 128) * 128)
    n_ceil = _round_up(n, 128)
    if n_ceil >= 256:
        row_tile = min(row_tile, _round_up((n_ceil + 1) // 2, 128))
    else:
        row_tile = min(row_tile, n_ceil)
    num_tiles = pl.cdiv(n, row_tile)   # ragged last block handled by Pallas

    kernel = _make_mlp_kernel(num_layers, lane_dense_out)

    # x_i / x_j: row-tiled, full feature dim.  Default double buffering is
    # enough to hide DMA at these tile sizes (Buffered(3) only inflates VMEM).
    x_spec = pl.BlockSpec((row_tile, in_dim), lambda i: (i, 0))
    in_specs = [x_spec, x_spec]

    flat_params = []
    for li, (w, b) in enumerate(params):
        if lane_dense_out and li == num_layers - 1:
            w = w.T  # (1, hid_prev): lane-dense row for the in-kernel NT dot_general
        # Weights/biases are tiny: full array per invocation, constant block index.
        in_specs.append(pl.BlockSpec(w.shape, lambda i: (0, 0)))
        in_specs.append(pl.BlockSpec(b.shape, lambda i: (0, 0)))
        flat_params.extend([w, b])

    if lane_dense_out:
        out_shape = jax.ShapeDtypeStruct((1, n), jnp.float32)
        out_specs = pl.BlockSpec((1, row_tile), lambda i: (0, i))
    else:
        out_shape = jax.ShapeDtypeStruct((n, out_dim), jnp.float32)
        out_specs = pl.BlockSpec((row_tile, out_dim), lambda i: (i, 0))

    # Raise scoped VMEM only when a user-requested huge tile needs it
    # (v5e default scoped VMEM is 16 MiB even though physical is 128 MiB).
    in_itemsize = jnp.dtype(x_i.dtype).itemsize
    in_block_bytes = row_tile * _round_up(in_dim, 128) * in_itemsize
    if lane_dense_out:
        out_block_bytes = 8 * _round_up(row_tile, 128) * 4
    else:
        out_block_bytes = row_tile * _round_up(out_dim, 128) * 4
    vmem_est = 2 * (2 * in_block_bytes) + 2 * out_block_bytes + (4 << 20)
    vmem_limit = None
    if vmem_est > (16 << 20):
        vmem_limit = min(_round_up(vmem_est, 1 << 20), 64 << 20)

    out = pl.pallas_call(
        kernel,
        out_shape=out_shape,
        grid_spec=pltpu.PrefetchScalarGridSpec(
            num_scalar_prefetch=0,
            grid=(num_tiles,),
            in_specs=in_specs,
            out_specs=out_specs,
        ),
        compiler_params=pltpu.CompilerParams(
            dimension_semantics=("parallel",),
            vmem_limit_bytes=vmem_limit),
    )(x_i, x_j, *flat_params)

    if lane_dense_out:
        if lane_major_output:
            return out                     # (1, n), no extra relayout
        return out.reshape(n, 1)           # tiny wrapper-side relayout to match torch
    return out


def init_params(key, in_dim, hid_dim, out_dim, num_layers):
    """Deterministic synthetic init. Weights stored as [fan_in, fan_out]."""
    dims = [in_dim] + [hid_dim] * (num_layers - 1) + [out_dim]
    params = []
    for l in range(num_layers):
        key, kw, kb = jax.random.split(key, 3)
        fan_in, fan_out = dims[l], dims[l + 1]
        bound = 1.0 / jnp.sqrt(fan_in)
        w = jax.random.uniform(kw, (fan_in, fan_out), jnp.float32, -bound, bound)
        b = jax.random.uniform(kb, (1, fan_out), jnp.float32, -bound, bound)
        params.append((w, b))
    return params


def reference_forward(x_i, x_j, params):
    x = x_i * x_j
    for l, (w, b) in enumerate(params):
        x = x @ w + b
        if l < len(params) - 1:
            x = jnp.maximum(x, 0.0)
    return jax.nn.sigmoid(x)


def _check(out, ref, tag, tol):
    assert out.shape == ref.shape, f"{tag}: shape {out.shape} vs {ref.shape}"
    assert jnp.allclose(out, ref, atol=tol, rtol=tol), f"{tag}: mismatch vs reference"


if __name__ == "__main__":
    # Small shapes consistent with the module: edge batch 200, in=32, hid=32, out=1.
    N, IN_DIM, HID_DIM, OUT_DIM, NUM_LAYERS = 200, 32, 32, 1, 3

    key = jax.random.PRNGKey(0)
    k_xi, k_xj, k_p = jax.random.split(key, 3)
    x_i = jax.random.normal(k_xi, (N, IN_DIM), jnp.float32)
    x_j = jax.random.normal(k_xj, (N, IN_DIM), jnp.float32)
    params = init_params(k_p, IN_DIM, HID_DIM, OUT_DIM, NUM_LAYERS)
    ref = reference_forward(x_i, x_j, params)

    # 1) Default config: >=2 tiles (v7x megacore), ragged last block, no jnp.pad.
    out = jax.block_until_ready(link_predictor_forward(x_i, x_j, params))
    _check(out, ref, "default", 2e-5)

    # 2) Explicit small tiles: multi-tile grid with a ragged last block.
    out2 = jax.block_until_ready(link_predictor_forward(x_i, x_j, params, row_tile=128))
    _check(out2, ref, "small-tile", 2e-5)

    # 3) bf16 input streaming (halved HBM traffic); in-kernel compute stays f32.
    xi16, xj16 = x_i.astype(jnp.bfloat16), x_j.astype(jnp.bfloat16)
    ref16 = reference_forward(xi16.astype(jnp.float32), xj16.astype(jnp.float32), params)
    out3 = jax.block_until_ready(link_predictor_forward(xi16, xj16, params))
    _check(out3, ref16, "bf16-inputs", 5e-5)

    # 4) Generic (out_dim > 1) fallback path: dense (row_tile, out_dim) output.
    params4 = init_params(jax.random.PRNGKey(1), IN_DIM, HID_DIM, 4, 2)
    ref4 = reference_forward(x_i, x_j, params4)
    out4 = jax.block_until_ready(link_predictor_forward(x_i, x_j, params4))
    _check(out4, ref4, "out_dim4", 2e-5)

    print("KERNEL_OK")
</pallas_src>

<mosaic_0001>
module attributes {stable_mosaic.version = 11 : i64} {
  func.func @kernel(%arg0: i32, %arg1: memref<128x32xf32, #tpu.memory_space<vmem>>, %arg2: memref<128x32xf32, #tpu.memory_space<vmem>>, %arg3: memref<32x32xf32, #tpu.memory_space<vmem>>, %arg4: memref<1x32xf32, #tpu.memory_space<vmem>>, %arg5: memref<32x32xf32, #tpu.memory_space<vmem>>, %arg6: memref<1x32xf32, #tpu.memory_space<vmem>>, %arg7: memref<1x32xf32, #tpu.memory_space<vmem>>, %arg8: memref<1x1xf32, #tpu.memory_space<vmem>>, %arg9: memref<1x128xf32, #tpu.memory_space<vmem>>) attributes {dimension_semantics = [#tpu.dimension_semantics<parallel>], iteration_bounds = array<i64: 2>, scalar_prefetch = 0 : i64, scratch_operands = 0 : i64, tpu.core_type = #tpu.core_type<tc>, window_params = [{transform_indices = @transform_0, window_bounds = array<i64: 128, 32>}, {transform_indices = @transform_1, window_bounds = array<i64: 128, 32>}, {pipeline_mode = #tpu.pipeline_mode<synchronous>, transform_indices = @transform_2, window_bounds = array<i64: 32, 32>}, {pipeline_mode = #tpu.pipeline_mode<synchronous>, transform_indices = @transform_3, window_bounds = array<i64: 1, 32>}, {pipeline_mode = #tpu.pipeline_mode<synchronous>, transform_indices = @transform_4, window_bounds = array<i64: 32, 32>}, {pipeline_mode = #tpu.pipeline_mode<synchronous>, transform_indices = @transform_5, window_bounds = array<i64: 1, 32>}, {pipeline_mode = #tpu.pipeline_mode<synchronous>, transform_indices = @transform_6, window_bounds = array<i64: 1, 32>}, {pipeline_mode = #tpu.pipeline_mode<synchronous>, transform_indices = @transform_7, window_bounds = array<i64: 1, 1>}, {transform_indices = @transform_8, window_bounds = array<i64: 1, 128>}]} {
    %c0 = arith.constant 0 : index
    %c0_0 = arith.constant 0 : index
    %0 = vector.load %arg1[%c0, %c0_0] : memref<128x32xf32, #tpu.memory_space<vmem>>, vector<128x32xf32>
    %c0_1 = arith.constant 0 : index
    %c0_2 = arith.constant 0 : index
    %1 = vector.load %arg2[%c0_1, %c0_2] : memref<128x32xf32, #tpu.memory_space<vmem>>, vector<128x32xf32>
    %2 = arith.mulf %0, %1 : vector<128x32xf32>
    %c0_3 = arith.constant 0 : index
    %c0_4 = arith.constant 0 : index
    %3 = vector.load %arg3[%c0_3, %c0_4] : memref<32x32xf32, #tpu.memory_space<vmem>>, vector<32x32xf32>
    %c0_5 = arith.constant 0 : index
    %c0_6 = arith.constant 0 : index
    %4 = vector.load %arg4[%c0_5, %c0_6] : memref<1x32xf32, #tpu.memory_space<vmem>>, vector<1x32xf32>
    %cst = arith.constant dense<0.000000e+00> : vector<128x32xf32>
    %5 = tpu.matmul %2, %3, %cst {dimension_numbers = #tpu.dot_dimension_numbers<[1], [0], [0], [1], [0, 0, 1, 1], [], []>} : vector<128x32xf32>, vector<32x32xf32>, vector<128x32xf32> -> vector<128x32xf32>
    %6 = vector.broadcast %4 : vector<1x32xf32> to vector<128x32xf32>
    %7 = arith.addf %5, %6 : vector<128x32xf32>
    %cst_7 = arith.constant 0.000000e+00 : f32
    %8 = vector.broadcast %cst_7 : f32 to vector<128x32xf32>
    %9 = arith.maximumf %7, %8 : vector<128x32xf32>
    %c0_8 = arith.constant 0 : index
    %c0_9 = arith.constant 0 : index
    %10 = vector.load %arg5[%c0_8, %c0_9] : memref<32x32xf32, #tpu.memory_space<vmem>>, vector<32x32xf32>
    %c0_10 = arith.constant 0 : index
    %c0_11 = arith.constant 0 : index
    %11 = vector.load %arg6[%c0_10, %c0_11] : memref<1x32xf32, #tpu.memory_space<vmem>>, vector<1x32xf32>
    %cst_12 = arith.constant dense<0.000000e+00> : vector<128x32xf32>
    %12 = tpu.matmul %9, %10, %cst_12 {dimension_numbers = #tpu.dot_dimension_numbers<[1], [0], [0], [1], [0, 0, 1, 1], [], []>} : vector<128x32xf32>, vector<32x32xf32>, vector<128x32xf32> -> vector<128x32xf32>
    %13 = vector.broadcast %11 : vector<1x32xf32> to vector<128x32xf32>
    %14 = arith.addf %12, %13 : vector<128x32xf32>
    %cst_13 = arith.constant 0.000000e+00 : f32
    %15 = vector.broadcast %cst_13 : f32 to vector<128x32xf32>
    %16 = arith.maximumf %14, %15 : vector<128x32xf32>
    %c0_14 = arith.constant 0 : index
    %c0_15 = arith.constant 0 : index
    %17 = vector.load %arg8[%c0_14, %c0_15] : memref<1x1xf32, #tpu.memory_space<vmem>>, vector<1x1xf32>
    %c0_16 = arith.constant 0 : index
    %c0_17 = arith.constant 0 : index
    %18 = vector.load %arg7[%c0_16, %c0_17] : memref<1x32xf32, #tpu.memory_space<vmem>>, vector<1x32xf32>
    %cst_18 = arith.constant dense<0.000000e+00> : vector<1x128xf32>
    %19 = tpu.matmul %18, %16, %cst_18 {dimension_numbers = #tpu.dot_dimension_numbers<[1], [1], [0], [0], [0, 0, 1, 0], [], []>} : vector<1x32xf32>, vector<128x32xf32>, vector<1x128xf32> -> vector<1x128xf32>
    %20 = vector.broadcast %17 : vector<1x1xf32> to vector<1x128xf32>
    %21 = arith.addf %19, %20 : vector<1x128xf32>
    %22 = arith.negf %21 : vector<1x128xf32>
    %23 = math.exp %22 : vector<1x128xf32>
    %cst_19 = arith.constant 1.000000e+00 : f32
    %24 = vector.broadcast %cst_19 : f32 to vector<1x128xf32>
    %25 = arith.addf %24, %23 : vector<1x128xf32>
    %26 = arith.divf %24, %25 : vector<1x128xf32>
    %c0_20 = arith.constant 0 : index
    %c0_21 = arith.constant 0 : index
    %27 = vector.load %arg9[%c0_20, %c0_21] : memref<1x128xf32, #tpu.memory_space<vmem>>, vector<1x128xf32>
    tpu.vector_store %arg9[%c0_20, %c0_21], %26 {strides = array<i32>} : memref<1x128xf32, #tpu.memory_space<vmem>>, vector<1x128xf32>,
    return
  }
  func.func @transform_0(%arg0: i32) -> (i32, i32) {
    %c0_i32 = arith.constant 0 : i32
    %c0_i32_0 = arith.constant 0 : i32
    return %arg0, %c0_i32 : i32, i32
  }
  func.func @transform_1(%arg0: i32) -> (i32, i32) {
    %c0_i32 = arith.constant 0 : i32
    %c0_i32_0 = arith.constant 0 : i32
    return %arg0, %c0_i32 : i32, i32
  }
  func.func @transform_2(%arg0: i32) -> (i32, i32) {
    %c0_i32 = arith.constant 0 : i32
    %c0_i32_0 = arith.constant 0 : i32
    %c0_i32_1 = arith.constant 0 : i32
    return %c0_i32, %c0_i32_0 : i32, i32
  }
  func.func @transform_3(%arg0: i32) -> (i32, i32) {
    %c0_i32 = arith.constant 0 : i32
    %c0_i32_0 = arith.constant 0 : i32
    %c0_i32_1 = arith.constant 0 : i32
    return %c0_i32, %c0_i32_0 : i32, i32
  }
  func.func @transform_4(%arg0: i32) -> (i32, i32) {
    %c0_i32 = arith.constant 0 : i32
    %c0_i32_0 = arith.constant 0 : i32
    %c0_i32_1 = arith.constant 0 : i32
    return %c0_i32, %c0_i32_0 : i32, i32
  }
  func.func @transform_5(%arg0: i32) -> (i32, i32) {
    %c0_i32 = arith.constant 0 : i32
    %c0_i32_0 = arith.constant 0 : i32
    %c0_i32_1 = arith.constant 0 : i32
    return %c0_i32, %c0_i32_0 : i32, i32
  }
  func.func @transform_6(%arg0: i32) -> (i32, i32) {
    %c0_i32 = arith.constant 0 : i32
    %c0_i32_0 = arith.constant 0 : i32
    %c0_i32_1 = arith.constant 0 : i32
    return %c0_i32, %c0_i32_0 : i32, i32
  }
  func.func @transform_7(%arg0: i32) -> (i32, i32) {
    %c0_i32 = arith.constant 0 : i32
    %c0_i32_0 = arith.constant 0 : i32
    %c0_i32_1 = arith.constant 0 : i32
    return %c0_i32, %c0_i32_0 : i32, i32
  }
  func.func @transform_8(%arg0: i32) -> (i32, i32) {
    %c0_i32 = arith.constant 0 : i32
    %c0_i32_0 = arith.constant 0 : i32
    return %c0_i32, %arg0 : i32, i32
  }
}

</mosaic_0001>

<llo_original>
// kernel: tpu_custom_call.1
$region0: #{tpu_custom_call.1}
  #allocation0 [shape = 'u32[]', space=smem, size = 0x4, offset = 0x4, fixed_abs, tag = 'smem constant byte address 0x4 - core index']
  #allocation1 [shape = 'u32[144,128]{1,0:T(1,128)}', space=vmem, size = 0x12000, scoped, tag = 'internal scratch']
  #allocation2 [shape = 'f32[1,1]{1,0:T(1,128)S(1)}', space=vmem, size = 0x200, scoped, tag = 'scoped memory for tpu_custom_call.1']
  %s0 = inlined_call_operand.vmem [shape: f32[200,32], index: 0, kind: input, shape index: {}]
  %s1 = inlined_call_operand.vmem [shape: f32[200,32], index: 1, kind: input, shape index: {}]
  %s2 = inlined_call_operand.vmem [shape: f32[32,32], index: 2, kind: input, shape index: {}]
  %s3 = inlined_call_operand.vmem [shape: f32[1,32], index: 3, kind: input, shape index: {}]
  %s4 = inlined_call_operand.vmem [shape: f32[32,32], index: 4, kind: input, shape index: {}]
  %s5 = inlined_call_operand.vmem [shape: f32[1,32], index: 5, kind: input, shape index: {}]
  %s6 = inlined_call_operand.vmem [shape: f32[1,32], index: 6, kind: input, shape index: {}]
  %s7 = inlined_call_operand.<no memory space> [shape: f32[1,1], index: 7, kind: input, shape index: {}]
  %s8 = inlined_call_operand.hbm [shape: f32[1,200], index: 8, kind: output, shape index: {}]
  %s9 = sld [smem:[#allocation0]]
  $region65: #{tpu_custom_call.1} parent=0
    _
  %s11 = ssub.s32 1, %s9
  %s12 = scalar_select 0, %s11, %s9
  %v13 = vstv %s7
  %14 = vst [vmem:[#allocation2] sm:$0x1] %v13
  $region1: #{tpu_custom_call.1} parent=0
    #allocation3 [shape = 'u8[1024]{0}', space=vmem, size = 0x400, scoped, tag = 'output window, operand 0']
    #allocation4 [shape = 's32[2]{0}', space=sflag, size = 0x8, scoped, tag = 'scoped memory for tpu_custom_call.1']
    %15 = vsyncpa [#allocation4], 0
    %s16 = scalar_lea.sflag [#allocation4], 1
    %17 = vsyncpa %s16, 0
    loop: start=0, step=1, limit=4
    $region2: #{tpu_custom_call.1} parent=1 // loop_pre_header
      _
    $region3: #{tpu_custom_call.1} parent=1 // loop_header
      %s19 = sphi 0, %s23
      %p20 = scmp.ge.s32.totalorder %s19, 4
      %s29 = sphi 0, %s31
      %s32 = sphi 0, %s29
      %s33 = sphi 0, %s32
      %s49 = sphi 0, %s33
      %s55 = sphi 0, %s57
      %s58 = sphi 0, %s55
      %s59 = sphi 0, %s58
      %s75 = sphi 0, %s59
      %s79 = sphi 0, %s79
      %s81 = sphi 0, %s79
      %s82 = sphi 0, %s81
      %s96 = sphi 0, %s82
      %s100 = sphi 0, %s100
      %s102 = sphi 0, %s100
      %s103 = sphi 0, %s102
      %s117 = sphi 0, %s103
      %s121 = sphi 0, %s121
      %s123 = sphi 0, %s121
      %s124 = sphi 0, %s123
      %s138 = sphi 0, %s124
      %s142 = sphi 0, %s142
      %s144 = sphi 0, %s142
      %s145 = sphi 0, %s144
      %s159 = sphi 0, %s145
      %s163 = sphi 0, %s163
      %s165 = sphi 0, %s163
      %s166 = sphi 0, %s165
      %s180 = sphi 0, %s166
      %s184 = sphi 0, %s184
      %s186 = sphi 0, %s184
      %s187 = sphi 0, %s186
      %s201 = sphi 0, %s187
      %s207 = sphi 0, %s209
      %s210 = sphi 0, %s207
      %s211 = sphi 0, %s210
      %s227 = sphi 0, %s211
    $region4: #{tpu_custom_call.1} parent=1 // loop_header_branch
      %22 = sbr.rel (%p20) target = $region8
    $region5: #{tpu_custom_call.1} parent=1 // loop_body
      %s24 = ssub.s32 %s19, 1
      %s25 = ssub.s32 %s19, 2
      %s26 = sadd.s32 %s19, 1
      %s27 = ssub.s32 %s19, %s26
      %p28 = scmp.eq.s32.totalorder %s27, 0
      %s30 = sadd.s32 %s29, 1
      %s31 = scalar_select %p28, %s29, %s30
      %p34 = pneg %p28
      %p35 = scmp.eq.s32.totalorder %s19, 1
      %p36 = por %p34, %p35
      %p37 = scmp.ne.s32.totalorder %s29, %s32
      %p38 = scmp.eq.s32.totalorder %s19, 0
      %p39 = por %p37, %p38
      %p40 = scmp.ne.s32.totalorder %s29, %s32
      %p41 = scmp.eq.s32.totalorder %s24, 1
      %p42 = por %p40, %p41
      %p43 = scmp.ne.s32.totalorder %s32, %s33
      %p44 = scmp.eq.s32.totalorder %s24, 0
      %p45 = por %p43, %p44
      %p46 = scmp.ne.s32.totalorder %s32, %s33
      %p47 = scmp.eq.s32.totalorder %s25, 1
      %p48 = por %p46, %p47
      %p50 = scmp.ne.s32.totalorder %s33, %s49
      %p51 = scmp.eq.s32.totalorder %s25, 0
      %p52 = por %p50, %p51
      %s53 = ssub.s32 %s19, %s26
      %p54 = scmp.eq.s32.totalorder %s53, 0
      %s56 = sadd.s32 %s55, 1
      %s57 = scalar_select %p54, %s55, %s56
      %p60 = pneg %p54
      %p61 = scmp.eq.s32.totalorder %s19, 1
      %p62 = por %p60, %p61
      %p63 = scmp.ne.s32.totalorder %s55, %s58
      %p64 = scmp.eq.s32.totalorder %s19, 0
      %p65 = por %p63, %p64
      %p66 = scmp.ne.s32.totalorder %s55, %s58
      %p67 = scmp.eq.s32.totalorder %s24, 1
      %p68 = por %p66, %p67
      %p69 = scmp.ne.s32.totalorder %s58, %s59
      %p70 = scmp.eq.s32.totalorder %s24, 0
      %p71 = por %p69, %p70
      %p72 = scmp.ne.s32.totalorder %s58, %s59
      %p73 = scmp.eq.s32.totalorder %s25, 1
      %p74 = por %p72, %p73
      %p76 = scmp.ne.s32.totalorder %s59, %s75
      %p77 = scmp.eq.s32.totalorder %s25, 0
      %p78 = por %p76, %p77
      %s80 = sadd.s32 %s79, 1
      %p83 = scmp.eq.s32.totalorder %s19, 1
      %p84 = scmp.ne.s32.totalorder %s79, %s81
      %p85 = scmp.eq.s32.totalorder %s19, 0
      %p86 = por %p84, %p85
      %p87 = scmp.ne.s32.totalorder %s79, %s81
      %p88 = scmp.eq.s32.totalorder %s24, 1
      %p89 = por %p87, %p88
      %p90 = scmp.ne.s32.totalorder %s81, %s82
      %p91 = scmp.eq.s32.totalorder %s24, 0
      %p92 = por %p90, %p91
      %p93 = scmp.ne.s32.totalorder %s81, %s82
      %p94 = scmp.eq.s32.totalorder %s25, 1
      %p95 = por %p93, %p94
      %p97 = scmp.ne.s32.totalorder %s82, %s96
      %p98 = scmp.eq.s32.totalorder %s25, 0
      %p99 = por %p97, %p98
      %s101 = sadd.s32 %s100, 1
      %p104 = scmp.eq.s32.totalorder %s19, 1
      %p105 = scmp.ne.s32.totalorder %s100, %s102
      %p106 = scmp.eq.s32.totalorder %s19, 0
      %p107 = por %p105, %p106
      %p108 = scmp.ne.s32.totalorder %s100, %s102
      %p109 = scmp.eq.s32.totalorder %s24, 1
      %p110 = por %p108, %p109
      %p111 = scmp.ne.s32.totalorder %s102, %s103
      %p112 = scmp.eq.s32.totalorder %s24, 0
      %p113 = por %p111, %p112
      %p114 = scmp.ne.s32.totalorder %s102, %s103
      %p115 = scmp.eq.s32.totalorder %s25, 1
      %p116 = por %p114, %p115
      %p118 = scmp.ne.s32.totalorder %s103, %s117
      %p119 = scmp.eq.s32.totalorder %s25, 0
      %p120 = por %p118, %p119
      %s122 = sadd.s32 %s121, 1
      %p125 = scmp.eq.s32.totalorder %s19, 1
      %p126 = scmp.ne.s32.totalorder %s121, %s123
      %p127 = scmp.eq.s32.totalorder %s19, 0
      %p128 = por %p126, %p127
      %p129 = scmp.ne.s32.totalorder %s121, %s123
      %p130 = scmp.eq.s32.totalorder %s24, 1
      %p131 = por %p129, %p130
      %p132 = scmp.ne.s32.totalorder %s123, %s124
      %p133 = scmp.eq.s32.totalorder %s24, 0
      %p134 = por %p132, %p133
      %p135 = scmp.ne.s32.totalorder %s123, %s124
      %p136 = scmp.eq.s32.totalorder %s25, 1
      %p137 = por %p135, %p136
      %p139 = scmp.ne.s32.totalorder %s124, %s138
      %p140 = scmp.eq.s32.totalorder %s25, 0
      %p141 = por %p139, %p140
      %s143 = sadd.s32 %s142, 1
      %p146 = scmp.eq.s32.totalorder %s19, 1
      %p147 = scmp.ne.s32.totalorder %s142, %s144
      %p148 = scmp.eq.s32.totalorder %s19, 0
      %p149 = por %p147, %p148
      %p150 = scmp.ne.s32.totalorder %s142, %s144
      %p151 = scmp.eq.s32.totalorder %s24, 1
      %p152 = por %p150, %p151
      %p153 = scmp.ne.s32.totalorder %s144, %s145
      %p154 = scmp.eq.s32.totalorder %s24, 0
      %p155 = por %p153, %p154
      %p156 = scmp.ne.s32.totalorder %s144, %s145
      %p157 = scmp.eq.s32.totalorder %s25, 1
      %p158 = por %p156, %p157
      %p160 = scmp.ne.s32.totalorder %s145, %s159
      %p161 = scmp.eq.s32.totalorder %s25, 0
      %p162 = por %p160, %p161
      %s164 = sadd.s32 %s163, 1
      %p167 = scmp.eq.s32.totalorder %s19, 1
      %p168 = scmp.ne.s32.totalorder %s163, %s165
      %p169 = scmp.eq.s32.totalorder %s19, 0
      %p170 = por %p168, %p169
      %p171 = scmp.ne.s32.totalorder %s163, %s165
      %p172 = scmp.eq.s32.totalorder %s24, 1
      %p173 = por %p171, %p172
      %p174 = scmp.ne.s32.totalorder %s165, %s166
      %p175 = scmp.eq.s32.totalorder %s24, 0
      %p176 = por %p174, %p175
      %p177 = scmp.ne.s32.totalorder %s165, %s166
      %p178 = scmp.eq.s32.totalorder %s25, 1
      %p179 = por %p177, %p178
      %p181 = scmp.ne.s32.totalorder %s166, %s180
      %p182 = scmp.eq.s32.totalorder %s25, 0
      %p183 = por %p181, %p182
      %s185 = sadd.s32 %s184, 1
      %p188 = scmp.eq.s32.totalorder %s19, 1
      %p189 = scmp.ne.s32.totalorder %s184, %s186
      %p190 = scmp.eq.s32.totalorder %s19, 0
      %p191 = por %p189, %p190
      %p192 = scmp.ne.s32.totalorder %s184, %s186
      %p193 = scmp.eq.s32.totalorder %s24, 1
      %p194 = por %p192, %p193
      %p195 = scmp.ne.s32.totalorder %s186, %s187
      %p196 = scmp.eq.s32.totalorder %s24, 0
      %p197 = por %p195, %p196
      %p198 = scmp.ne.s32.totalorder %s186, %s187
      %p199 = scmp.eq.s32.totalorder %s25, 1
      %p200 = por %p198, %p199
      %p202 = scmp.ne.s32.totalorder %s187, %s201
      %p203 = scmp.eq.s32.totalorder %s25, 0
      %p204 = por %p202, %p203
      %s205 = ssub.s32 %s19, %s26
      %p206 = scmp.eq.s32.totalorder %s205, 0
      %s208 = sadd.s32 %s207, 1
      %s209 = scalar_select %p206, %s207, %s208
      %p212 = pneg %p206
      %p213 = scmp.eq.s32.totalorder %s19, 1
      %p214 = por %p212, %p213
      %p215 = scmp.ne.s32.totalorder %s207, %s210
      %p216 = scmp.eq.s32.totalorder %s19, 0
      %p217 = por %p215, %p216
      %p218 = scmp.ne.s32.totalorder %s207, %s210
      %p219 = scmp.eq.s32.totalorder %s24, 1
      %p220 = por %p218, %p219
      %p221 = scmp.ne.s32.totalorder %s210, %s211
      %p222 = scmp.eq.s32.totalorder %s24, 0
      %p223 = por %p221, %p222
      %p224 = scmp.ne.s32.totalorder %s210, %s211
      %p225 = scmp.eq.s32.totalorder %s25, 1
      %p226 = por %p224, %p225
      %p228 = scmp.ne.s32.totalorder %s211, %s227
      %p229 = scmp.eq.s32.totalorder %s25, 0
      %p230 = por %p228, %p229
      %p231 = scmp.le.s32.totalorder 1, %s19
      %p232 = scmp.lt.s32.totalorder %s19, 3
      %p233 = pnand %p231, %p232
      %p234 = pneg %p233
      // Predicated region
      $region9: #{tpu_custom_call.1} parent=5 // pred_check
        _
      $region10: #{tpu_custom_call.1} parent=5 // pred_check_branch
        %236 = sbr.rel (%p233) target = $region12
      $region11: #{tpu_custom_call.1} parent=5 // pred_region
        %s237 = ssub.s32 %s19, 1
        // Predicated region
        $region13: #{tpu_custom_call.1} parent=11 // pred_check
          %p238 = pneg %p92
        $region14: #{tpu_custom_call.1} parent=11 // pred_check_branch
          %240 = sbr.rel (%p238) target = $region16
        $region15: #{tpu_custom_call.1} parent=11 // pred_region
          _
        $region16: #{tpu_custom_call.1} parent=11 // pred_fallthru
          _
        // Predicated region
        $region17: #{tpu_custom_call.1} parent=11 // pred_check
          %p241 = pneg %p113
        $region18: #{tpu_custom_call.1} parent=11 // pred_check_branch
          %243 = sbr.rel (%p241) target = $region20
        $region19: #{tpu_custom_call.1} parent=11 // pred_region
          _
        $region20: #{tpu_custom_call.1} parent=11 // pred_fallthru
          _
        // Predicated region
        $region21: #{tpu_custom_call.1} parent=11 // pred_check
          %p244 = pneg %p134
        $region22: #{tpu_custom_call.1} parent=11 // pred_check_branch
          %246 = sbr.rel (%p244) target = $region24
        $region23: #{tpu_custom_call.1} parent=11 // pred_region
          _
        $region24: #{tpu_custom_call.1} parent=11 // pred_fallthru
          _
        // Predicated region
        $region25: #{tpu_custom_call.1} parent=11 // pred_check
          %p247 = pneg %p155
        $region26: #{tpu_custom_call.1} parent=11 // pred_check_branch
          %249 = sbr.rel (%p247) target = $region28
        $region27: #{tpu_custom_call.1} parent=11 // pred_region
          _
        $region28: #{tpu_custom_call.1} parent=11 // pred_fallthru
          _
        // Predicated region
        $region29: #{tpu_custom_call.1} parent=11 // pred_check
          %p250 = pneg %p176
        $region30: #{tpu_custom_call.1} parent=11 // pred_check_branch
          %252 = sbr.rel (%p250) target = $region32
        $region31: #{tpu_custom_call.1} parent=11 // pred_region
          _
        $region32: #{tpu_custom_call.1} parent=11 // pred_fallthru
          _
        // Predicated region
        $region33: #{tpu_custom_call.1} parent=11 // pred_check
          %p253 = pneg %p197
        $region34: #{tpu_custom_call.1} parent=11 // pred_check_branch
          %255 = sbr.rel (%p253) target = $region36
        $region35: #{tpu_custom_call.1} parent=11 // pred_region
          _
        $region36: #{tpu_custom_call.1} parent=11 // pred_fallthru
          _
      $region12: #{tpu_custom_call.1} parent=5 // pred_fallthru
        _
      %p256 = scmp.lt.s32.totalorder %s19, 2
      // Predicated region
      $region37: #{tpu_custom_call.1} parent=5 // pred_check
        %p257 = pneg %p256
      $region38: #{tpu_custom_call.1} parent=5 // pred_check_branch
        %259 = sbr.rel (%p257) target = $region40
      $region39: #{tpu_custom_call.1} parent=5 // pred_region
        // Predicated region
        $region41: #{tpu_custom_call.1} parent=39 // pred_check
          %p260 = pneg %p39
        $region42: #{tpu_custom_call.1} parent=39 // pred_check_branch
          %262 = sbr.rel (%p260) target = $region44
        $region43: #{tpu_custom_call.1} parent=39 // pred_region
          %s263 = smul.u32 16, %s19
          %s264 = ssub.s32 25, %s263
          %p265 = scmp.lt.s32.totalorder %s264, 16
          %s266 = scalar_select %p265, %s264, 16
          %s267 = smul.u32 128, %s266
          %p268 = scmp.lt.s32.totalorder %s263, 24
          %s269 = scalar_select %p268, %s263, 24
          %s270 = smul.addr %s269, 8
          %s271 = scalar_lea.vmem %s0, %s270
          %s272 = smul.u32 16, %s19
          %s273 = ssub.s32 25, %s272
          %p274 = scmp.lt.s32.totalorder %s273, 16
          %s275 = scalar_select %p274, %s273, 16
          %s276 = smul.u32 128, %s275
        $region44: #{tpu_custom_call.1} parent=39 // pred_fallthru
          _
        // Predicated region
        $region45: #{tpu_custom_call.1} parent=39 // pred_check
          %p277 = pneg %p65
        $region46: #{tpu_custom_call.1} parent=39 // pred_check_branch
          %279 = sbr.rel (%p277) target = $region48
        $region47: #{tpu_custom_call.1} parent=39 // pred_region
          %s280 = smul.u32 16, %s19
          %s281 = ssub.s32 25, %s280
          %p282 = scmp.lt.s32.totalorder %s281, 16
          %s283 = scalar_select %p282, %s281, 16
          %s284 = smul.u32 128, %s283
          %p285 = scmp.lt.s32.totalorder %s280, 24
          %s286 = scalar_select %p285, %s280, 24
          %s287 = smul.addr %s286, 8
          %s288 = scalar_lea.vmem %s1, %s287
          %s289 = smul.u32 16, %s19
          %s290 = ssub.s32 25, %s289
          %p291 = scmp.lt.s32.totalorder %s290, 16
          %s292 = scalar_select %p291, %s290, 16
          %s293 = smul.u32 128, %s292
        $region48: #{tpu_custom_call.1} parent=39 // pred_fallthru
          _
      $region40: #{tpu_custom_call.1} parent=5 // pred_fallthru
        _
      %p294 = scmp.le.s32.totalorder 1, %s19
      %p295 = scmp.lt.s32.totalorder %s19, 3
      %p296 = pnand %p294, %p295
      %p297 = pneg %p296
      // Predicated region
      $region49: #{tpu_custom_call.1} parent=5 // pred_check
        _
      $region50: #{tpu_custom_call.1} parent=5 // pred_check_branch
        %299 = sbr.rel (%p296) target = $region52
      $region51: #{tpu_custom_call.1} parent=5 // pred_region
        %s300 = ssub.s32 %s19, 1
        %s301 = smul.u32 16, %s24
        %s302 = ssub.s32 25, %s301
        %p303 = scmp.lt.s32.totalorder %s302, 16
        %s304 = scalar_select %p303, %s302, 16
        %s305 = smul.u32 128, %s304
        %p306 = scmp.lt.s32.totalorder %s301, 24
        %s307 = scalar_select %p306, %s301, 24
        %s308 = smul.addr %s307, 8
        %s309 = scalar_lea.vmem %s0, %s308
        %p310 = pneg %p45
        %p311 = pneg %p42
        %s312 = smul.u32 16, %s24
        %s313 = ssub.s32 25, %s312
        %p314 = scmp.lt.s32.totalorder %s313, 16
        %s315 = scalar_select %p314, %s313, 16
        %s316 = smul.u32 128, %s315
        %p317 = scmp.lt.s32.totalorder %s312, 24
        %s318 = scalar_select %p317, %s312, 24
        %s319 = smul.addr %s318, 8
        %s320 = scalar_lea.vmem %s1, %s319
        %p321 = pneg %p71
        %p322 = pneg %p68
        %p323 = pneg %p92
        %p324 = pneg %p89
        %p325 = pneg %p113
        %p326 = pneg %p110
        %p327 = pneg %p134
        %p328 = pneg %p131
        %p329 = pneg %p155
        %p330 = pneg %p152
        %p331 = pneg %p176
        %p332 = pneg %p173
        %p333 = pneg %p197
        %p334 = pneg %p194
        %p335 = pneg %p223
        %p336 = pneg %p220
        %s337 = sand.u32 %s210, 1
        %s338 = scalar_lea.sflag [#allocation4], %s337
        %s339 = sand.u32 %s210, 1
        %s340 = scalar_lea.vmem [#allocation3], %s339
        %s341 = smul.u32 16, %s24
        %s342 = ssub.s32 25, %s341
        %p343 = scmp.lt.s32.totalorder %s342, 16
        %s344 = scalar_select %p343, %s342, 16
        %s345 = smul.u32 128, %s344
        %p346 = scmp.lt.s32.totalorder %s341, 24
        %s347 = scalar_select %p346, %s341, 24
        %s348 = smul.addr %s347, 8
        %s349 = scalar_lea.vmem %s0, %s348
        %s350 = smul.u32 16, %s24
        %s351 = ssub.s32 25, %s350
        %p352 = scmp.lt.s32.totalorder %s351, 16
        %s353 = scalar_select %p352, %s351, 16
        %s354 = smul.u32 128, %s353
        %s355 = smul.u32 16, %s24
        %s356 = ssub.s32 25, %s355
        %p357 = scmp.lt.s32.totalorder %s356, 16
        %s358 = scalar_select %p357, %s356, 16
        %s359 = smul.u32 128, %s358
        %p360 = scmp.lt.s32.totalorder %s355, 24
        %s361 = scalar_select %p360, %s355, 24
        %s362 = smul.addr %s361, 8
        %s363 = scalar_lea.vmem %s1, %s362
        %s364 = smul.u32 16, %s24
        %s365 = ssub.s32 25, %s364
        %p366 = scmp.lt.s32.totalorder %s365, 16
        %s367 = scalar_select %p366, %s365, 16
        %s368 = smul.u32 128, %s367
        %v369 = vld [vmem:[%s349] sm:$0xff]
        %v370 = vld [vmem:[%s349 + $0x8] sm:$0xff]
        %v371 = vld [vmem:[%s349 + $0x10] sm:$0xff]
        %v372 = vld [vmem:[%s349 + $0x18] sm:$0xff]
        %v373 = vld [vmem:[%s349 + $0x20] sm:$0xff]
        %v374 = vld [vmem:[%s349 + $0x28] sm:$0xff]
        %v375 = vld [vmem:[%s349 + $0x30] sm:$0xff]
        %v376 = vld [vmem:[%s349 + $0x38] sm:$0xff]
        %v377 = vld [vmem:[%s349 + $0x40] sm:$0xff]
        %v378 = vld [vmem:[%s349 + $0x48] sm:$0xff]
        %v379 = vld [vmem:[%s349 + $0x50] sm:$0xff]
        %v380 = vld [vmem:[%s349 + $0x58] sm:$0xff]
        %v381 = vld [vmem:[%s349 + $0x60] sm:$0xff]
        %v382 = vld [vmem:[%s349 + $0x68] sm:$0xff]
        %v383 = vld [vmem:[%s349 + $0x70] sm:$0xff]
        %v384 = vld [vmem:[%s349 + $0x78] sm:$0xff]
        %v385 = vld [vmem:[%s363] sm:$0xff]
        %v386 = vld [vmem:[%s363 + $0x8] sm:$0xff]
        %v387 = vld [vmem:[%s363 + $0x10] sm:$0xff]
        %v388 = vld [vmem:[%s363 + $0x18] sm:$0xff]
        %v389 = vld [vmem:[%s363 + $0x20] sm:$0xff]
        %v390 = vld [vmem:[%s363 + $0x28] sm:$0xff]
        %v391 = vld [vmem:[%s363 + $0x30] sm:$0xff]
        %v392 = vld [vmem:[%s363 + $0x38] sm:$0xff]
        %v393 = vld [vmem:[%s363 + $0x40] sm:$0xff]
        %v394 = vld [vmem:[%s363 + $0x48] sm:$0xff]
        %v395 = vld [vmem:[%s363 + $0x50] sm:$0xff]
        %v396 = vld [vmem:[%s363 + $0x58] sm:$0xff]
        %v397 = vld [vmem:[%s363 + $0x60] sm:$0xff]
        %v398 = vld [vmem:[%s363 + $0x68] sm:$0xff]
        %v399 = vld [vmem:[%s363 + $0x70] sm:$0xff]
        %v400 = vld [vmem:[%s363 + $0x78] sm:$0xff]
        %v401 = vmul.f32 %v369, %v385
        %v402 = vmul.f32 %v370, %v386
        %v403 = vmul.f32 %v371, %v387
        %v404 = vmul.f32 %v372, %v388
        %v405 = vmul.f32 %v373, %v389
        %v406 = vmul.f32 %v374, %v390
        %v407 = vmul.f32 %v375, %v391
        %v408 = vmul.f32 %v376, %v392
        %v409 = vmul.f32 %v377, %v393
        %v410 = vmul.f32 %v378, %v394
        %v411 = vmul.f32 %v379, %v395
        %v412 = vmul.f32 %v380, %v396
        %v413 = vmul.f32 %v381, %v397
        %v414 = vmul.f32 %v382, %v398
        %v415 = vmul.f32 %v383, %v399
        %v416 = vmul.f32 %v384, %v400
        %v417 = vld [vmem:[%s2] sm:$0xff]
        %v418 = vld [vmem:[%s2 + $0x8] sm:$0xff]
        %v419 = vld [vmem:[%s2 + $0x10] sm:$0xff]
        %v420 = vld [vmem:[%s2 + $0x18] sm:$0xff]
        %v421 = vld [vmem:[%s3] sm:$0x1]
        %v423 = vlaneseq
        %v424 = vshrl.u32 %v423, 7
        %v425 = vsub.s32 0, %v424
        %v426 = vrot.slane %v421, %v425
        %vm428 = vcmask 261120
        %v430 = vsel %vm428, %v401, 0
        %v433 = vsel %vm428, %v402, 0
        %v436 = vsel %vm428, %v403, 0
        %v439 = vsel %vm428, %v404, 0
        %v442 = vsel %vm428, %v405, 0
        %v445 = vsel %vm428, %v406, 0
        %v448 = vsel %vm428, %v407, 0
        %v451 = vsel %vm428, %v408, 0
        %v454 = vsel %vm428, %v409, 0
        %v457 = vsel %vm428, %v410, 0
        %v460 = vsel %vm428, %v411, 0
        %v463 = vsel %vm428, %v412, 0
        %v466 = vsel %vm428, %v413, 0
        %v469 = vsel %vm428, %v414, 0
        %v472 = vsel %vm428, %v415, 0
        %v475 = vsel %vm428, %v416, 0
        %477 = vmatprep.subr.mxu0 0.0
        %478 = vmatpush1.msra.mxu0 0.0
        %479 = vmatprep.subr.mxu0 0.0
        %480 = vmatpush1.msra.mxu0 0.0
        %481 = vmatprep.subr.mxu0 0.0
        %482 = vmatpush1.msra.mxu0 0.0
        %483 = vmatprep.subr.mxu0 0.0
        %484 = vmatpush1.msra.mxu0 0.0
        %485 = vmatprep.subr.mxu0 0.0
        %486 = vmatpush1.msra.mxu0 0.0
        %487 = vmatprep.subr.mxu0 0.0
        %488 = vmatpush1.msra.mxu0 0.0
        %489 = vmatprep.subr.mxu0 0.0
        %490 = vmatpush1.msra.mxu0 0.0
        %491 = vmatprep.subr.mxu0 0.0
        %492 = vmatpush1.msra.mxu0 0.0
        %493 = vmatprep.subr.mxu0 0.0
        %494 = vmatpush1.msra.mxu0 0.0
        %495 = vmatprep.subr.mxu0 0.0
        %496 = vmatpush1.msra.mxu0 0.0
        %497 = vmatprep.subr.mxu0 0.0
        %498 = vmatpush1.msra.mxu0 0.0
        %499 = vmatprep.subr.mxu0 0.0
        %500 = vmatpush1.msra.mxu0 0.0
        %501 = vmatprep.subr.mxu0 0.0
        %502 = vmatpush1.msra.mxu0 %v420
        %503 = vmatprep.subr.mxu0 0.0
        %504 = vmatpush1.msra.mxu0 %v419
        %505 = vmatprep.subr.mxu0 0.0
        %506 = vmatpush1.msra.mxu0 %v418
        %507 = vmatprep.subr.mxu0 0.0
        %508 = vmatpush1.msra.mxu0 %v417
        %509 = vmatprep.subr.mxu0 0.0
        %510 = vmatpush2.msra.mxu0 0.0
        %511 = vmatprep.subr.mxu0 0.0
        %512 = vmatpush2.msra.mxu0 0.0
        %513 = vmatprep.subr.mxu0 0.0
        %514 = vmatpush2.msra.mxu0 0.0
        %515 = vmatprep.subr.mxu0 0.0
        %516 = vmatpush2.msra.mxu0 0.0
        %517 = vmatprep.subr.mxu0 0.0
        %518 = vmatpush2.msra.mxu0 0.0
        %519 = vmatprep.subr.mxu0 0.0
        %520 = vmatpush2.msra.mxu0 0.0
        %521 = vmatprep.subr.mxu0 0.0
        %522 = vmatpush2.msra.mxu0 0.0
        %523 = vmatprep.subr.mxu0 0.0
        %524 = vmatpush2.msra.mxu0 0.0
        %525 = vmatprep.subr.mxu0 0.0
        %526 = vmatpush2.msra.mxu0 0.0
        %527 = vmatprep.subr.mxu0 0.0
        %528 = vmatpush2.msra.mxu0 0.0
        %529 = vmatprep.subr.mxu0 0.0
        %530 = vmatpush2.msra.mxu0 0.0
        %531 = vmatprep.subr.mxu0 0.0
        %532 = vmatpush2.msra.mxu0 0.0
        %533 = vmatprep.subr.mxu0 0.0
        %534 = vmatpush2.msra.mxu0 0.0
        %535 = vmatprep.subr.mxu0 0.0
        %536 = vmatpush2.msra.mxu0 0.0
        %537 = vmatprep.subr.mxu0 0.0
        %538 = vmatpush2.msra.mxu0 0.0
        %539 = vmatprep.subr.mxu0 0.0
        %540 = vmatpush2.msra.mxu0 0.0
        %541 = vmatprep.mubr.f32.mxu0 0.0
        %542 = vmatmul.mubr.f32.gmra.mxu0 %v430
        %v543 = vpop.f32.mrf.mxu0
        %v544 = vadd.f32 %v426, %v543
        %v545 = vpop.f32.mrf.mxu0
        %546 = vmatprep.mubr.f32.mxu0 0.0
        %547 = vmatmul.mubr.f32.gmra.mxu0 %v433
        %v548 = vpop.f32.mrf.mxu0
        %v549 = vadd.f32 %v426, %v548
        %v550 = vpop.f32.mrf.mxu0
        %551 = vmatprep.mubr.f32.mxu0 0.0
        %552 = vmatmul.mubr.f32.gmra.mxu0 %v436
        %v553 = vpop.f32.mrf.mxu0
        %v554 = vadd.f32 %v426, %v553
        %v555 = vpop.f32.mrf.mxu0
        %556 = vmatprep.mubr.f32.mxu0 0.0
        %557 = vmatmul.mubr.f32.gmra.mxu0 %v439
        %v558 = vpop.f32.mrf.mxu0
        %v559 = vadd.f32 %v426, %v558
        %v560 = vpop.f32.mrf.mxu0
        %561 = vmatprep.mubr.f32.mxu0 0.0
        %562 = vmatmul.mubr.f32.gmra.mxu0 %v442
        %v563 = vpop.f32.mrf.mxu0
        %v564 = vadd.f32 %v426, %v563
        %v565 = vpop.f32.mrf.mxu0
        %566 = vmatprep.mubr.f32.mxu0 0.0
        %567 = vmatmul.mubr.f32.gmra.mxu0 %v445
        %v568 = vpop.f32.mrf.mxu0
        %v569 = vadd.f32 %v426, %v568
        %v570 = vpop.f32.mrf.mxu0
        %571 = vmatprep.mubr.f32.mxu0 0.0
        %572 = vmatmul.mubr.f32.gmra.mxu0 %v448
        %v573 = vpop.f32.mrf.mxu0
        %v574 = vadd.f32 %v426, %v573
        %v575 = vpop.f32.mrf.mxu0
        %576 = vmatprep.mubr.f32.mxu0 0.0
        %577 = vmatmul.mubr.f32.gmra.mxu0 %v451
        %v578 = vpop.f32.mrf.mxu0
        %v579 = vadd.f32 %v426, %v578
        %v580 = vpop.f32.mrf.mxu0
        %581 = vmatprep.mubr.f32.mxu0 0.0
        %582 = vmatmul.mubr.f32.gmra.mxu0 %v454
        %v583 = vpop.f32.mrf.mxu0
        %v584 = vadd.f32 %v426, %v583
        %v585 = vpop.f32.mrf.mxu0
        %586 = vmatprep.mubr.f32.mxu0 0.0
        %587 = vmatmul.mubr.f32.gmra.mxu0 %v457
        %v588 = vpop.f32.mrf.mxu0
        %v589 = vadd.f32 %v426, %v588
        %v590 = vpop.f32.mrf.mxu0
        %591 = vmatprep.mubr.f32.mxu0 0.0
        %592 = vmatmul.mubr.f32.gmra.mxu0 %v460
        %v593 = vpop.f32.mrf.mxu0
        %v594 = vadd.f32 %v426, %v593
        %v595 = vpop.f32.mrf.mxu0
        %596 = vmatprep.mubr.f32.mxu0 0.0
        %597 = vmatmul.mubr.f32.gmra.mxu0 %v463
        %v598 = vpop.f32.mrf.mxu0
        %v599 = vadd.f32 %v426, %v598
        %v600 = vpop.f32.mrf.mxu0
        %601 = vmatprep.mubr.f32.mxu0 0.0
        %602 = vmatmul.mubr.f32.gmra.mxu0 %v466
        %v603 = vpop.f32.mrf.mxu0
        %v604 = vadd.f32 %v426, %v603
        %v605 = vpop.f32.mrf.mxu0
        %606 = vmatprep.mubr.f32.mxu0 0.0
        %607 = vmatmul.mubr.f32.gmra.mxu0 %v469
        %v608 = vpop.f32.mrf.mxu0
        %v609 = vadd.f32 %v426, %v608
        %v610 = vpop.f32.mrf.mxu0
        %611 = vmatprep.mubr.f32.mxu0 0.0
        %612 = vmatmul.mubr.f32.gmra.mxu0 %v472
        %v613 = vpop.f32.mrf.mxu0
        %v614 = vadd.f32 %v426, %v613
        %v615 = vpop.f32.mrf.mxu0
        %616 = vmatprep.mubr.f32.mxu0 0.0
        %617 = vmatmul.mubr.f32.gmra.mxu0 %v475
        %v618 = vpop.f32.mrf.mxu0
        %v619 = vadd.f32 %v426, %v618
        %v620 = vpop.f32.mrf.mxu0
        %621 = vdwg.mxu0
        %v622 = vmax.f32 %v544, 0.0
        %v623 = vmax.f32 %v549, 0.0
        %v624 = vmax.f32 %v554, 0.0
        %v625 = vmax.f32 %v559, 0.0
        %v626 = vmax.f32 %v564, 0.0
        %v627 = vmax.f32 %v569, 0.0
        %v628 = vmax.f32 %v574, 0.0
        %v629 = vmax.f32 %v579, 0.0
        %v630 = vmax.f32 %v584, 0.0
        %v631 = vmax.f32 %v589, 0.0
        %v632 = vmax.f32 %v594, 0.0
        %v633 = vmax.f32 %v599, 0.0
        %v634 = vmax.f32 %v604, 0.0
        %v635 = vmax.f32 %v609, 0.0
        %v636 = vmax.f32 %v614, 0.0
        %v637 = vmax.f32 %v619, 0.0
        %v638 = vld [vmem:[%s4] sm:$0xff]
        %v639 = vld [vmem:[%s4 + $0x8] sm:$0xff]
        %v640 = vld [vmem:[%s4 + $0x10] sm:$0xff]
        %v641 = vld [vmem:[%s4 + $0x18] sm:$0xff]
        %v642 = vld [vmem:[%s5] sm:$0x1]
        %v644 = vlaneseq
        %v645 = vshrl.u32 %v644, 7
        %v646 = vsub.s32 0, %v645
        %v647 = vrot.slane %v642, %v646
        %v650 = vsel %vm428, %v622, 0
        %v653 = vsel %vm428, %v623, 0
        %v656 = vsel %vm428, %v624, 0
        %v659 = vsel %vm428, %v625, 0
        %v662 = vsel %vm428, %v626, 0
        %v665 = vsel %vm428, %v627, 0
        %v668 = vsel %vm428, %v628, 0
        %v671 = vsel %vm428, %v629, 0
        %v674 = vsel %vm428, %v630, 0
        %v677 = vsel %vm428, %v631, 0
        %v680 = vsel %vm428, %v632, 0
        %v683 = vsel %vm428, %v633, 0
        %v686 = vsel %vm428, %v634, 0
        %v689 = vsel %vm428, %v635, 0
        %v692 = vsel %vm428, %v636, 0
        %v695 = vsel %vm428, %v637, 0
        %697 = vmatprep.subr.mxu0 0.0
        %698 = vmatpush1.msra.mxu0 0.0
        %699 = vmatprep.subr.mxu0 0.0
        %700 = vmatpush1.msra.mxu0 0.0
        %701 = vmatprep.subr.mxu0 0.0
        %702 = vmatpush1.msra.mxu0 0.0
        %703 = vmatprep.subr.mxu0 0.0
        %704 = vmatpush1.msra.mxu0 0.0
        %705 = vmatprep.subr.mxu0 0.0
        %706 = vmatpush1.msra.mxu0 0.0
        %707 = vmatprep.subr.mxu0 0.0
        %708 = vmatpush1.msra.mxu0 0.0
        %709 = vmatprep.subr.mxu0 0.0
        %710 = vmatpush1.msra.mxu0 0.0
        %711 = vmatprep.subr.mxu0 0.0
        %712 = vmatpush1.msra.mxu0 0.0
        %713 = vmatprep.subr.mxu0 0.0
        %714 = vmatpush1.msra.mxu0 0.0
        %715 = vmatprep.subr.mxu0 0.0
        %716 = vmatpush1.msra.mxu0 0.0
        %717 = vmatprep.subr.mxu0 0.0
        %718 = vmatpush1.msra.mxu0 0.0
        %719 = vmatprep.subr.mxu0 0.0
        %720 = vmatpush1.msra.mxu0 0.0
        %721 = vmatprep.subr.mxu0 0.0
        %722 = vmatpush1.msra.mxu0 %v641
        %723 = vmatprep.subr.mxu0 0.0
        %724 = vmatpush1.msra.mxu0 %v640
        %725 = vmatprep.subr.mxu0 0.0
        %726 = vmatpush1.msra.mxu0 %v639
        %727 = vmatprep.subr.mxu0 0.0
        %728 = vmatpush1.msra.mxu0 %v638
        %729 = vmatprep.subr.mxu0 0.0
        %730 = vmatpush2.msra.mxu0 0.0
        %731 = vmatprep.subr.mxu0 0.0
        %732 = vmatpush2.msra.mxu0 0.0
        %733 = vmatprep.subr.mxu0 0.0
        %734 = vmatpush2.msra.mxu0 0.0
        %735 = vmatprep.subr.mxu0 0.0
        %736 = vmatpush2.msra.mxu0 0.0
        %737 = vmatprep.subr.mxu0 0.0
        %738 = vmatpush2.msra.mxu0 0.0
        %739 = vmatprep.subr.mxu0 0.0
        %740 = vmatpush2.msra.mxu0 0.0
        %741 = vmatprep.subr.mxu0 0.0
        %742 = vmatpush2.msra.mxu0 0.0
        %743 = vmatprep.subr.mxu0 0.0
        %744 = vmatpush2.msra.mxu0 0.0
        %745 = vmatprep.subr.mxu0 0.0
        %746 = vmatpush2.msra.mxu0 0.0
        %747 = vmatprep.subr.mxu0 0.0
        %748 = vmatpush2.msra.mxu0 0.0
        %749 = vmatprep.subr.mxu0 0.0
        %750 = vmatpush2.msra.mxu0 0.0
        %751 = vmatprep.subr.mxu0 0.0
        %752 = vmatpush2.msra.mxu0 0.0
        %753 = vmatprep.subr.mxu0 0.0
        %754 = vmatpush2.msra.mxu0 0.0
        %755 = vmatprep.subr.mxu0 0.0
        %756 = vmatpush2.msra.mxu0 0.0
        %757 = vmatprep.subr.mxu0 0.0
        %758 = vmatpush2.msra.mxu0 0.0
        %759 = vmatprep.subr.mxu0 0.0
        %760 = vmatpush2.msra.mxu0 0.0
        %761 = vmatprep.mubr.f32.mxu0 0.0
        %762 = vmatmul.mubr.f32.gmra.mxu0 %v650
        %v763 = vpop.f32.mrf.mxu0
        %v764 = vadd.f32 %v647, %v763
        %v765 = vpop.f32.mrf.mxu0
        %766 = vmatprep.mubr.f32.mxu0 0.0
        %767 = vmatmul.mubr.f32.gmra.mxu0 %v653
        %v768 = vpop.f32.mrf.mxu0
        %v769 = vadd.f32 %v647, %v768
        %v770 = vpop.f32.mrf.mxu0
        %771 = vmatprep.mubr.f32.mxu0 0.0
        %772 = vmatmul.mubr.f32.gmra.mxu0 %v656
        %v773 = vpop.f32.mrf.mxu0
        %v774 = vadd.f32 %v647, %v773
        %v775 = vpop.f32.mrf.mxu0
        %776 = vmatprep.mubr.f32.mxu0 0.0
        %777 = vmatmul.mubr.f32.gmra.mxu0 %v659
        %v778 = vpop.f32.mrf.mxu0
        %v779 = vadd.f32 %v647, %v778
        %v780 = vpop.f32.mrf.mxu0
        %781 = vmatprep.mubr.f32.mxu0 0.0
        %782 = vmatmul.mubr.f32.gmra.mxu0 %v662
        %v783 = vpop.f32.mrf.mxu0
        %v784 = vadd.f32 %v647, %v783
        %v785 = vpop.f32.mrf.mxu0
        %786 = vmatprep.mubr.f32.mxu0 0.0
        %787 = vmatmul.mubr.f32.gmra.mxu0 %v665
        %v788 = vpop.f32.mrf.mxu0
        %v789 = vadd.f32 %v647, %v788
        %v790 = vpop.f32.mrf.mxu0
        %791 = vmatprep.mubr.f32.mxu0 0.0
        %792 = vmatmul.mubr.f32.gmra.mxu0 %v668
        %v793 = vpop.f32.mrf.mxu0
        %v794 = vadd.f32 %v647, %v793
        %v795 = vpop.f32.mrf.mxu0
        %796 = vmatprep.mubr.f32.mxu0 0.0
        %797 = vmatmul.mubr.f32.gmra.mxu0 %v671
        %v798 = vpop.f32.mrf.mxu0
        %v799 = vadd.f32 %v647, %v798
        %v800 = vpop.f32.mrf.mxu0
        %801 = vmatprep.mubr.f32.mxu0 0.0
        %802 = vmatmul.mubr.f32.gmra.mxu0 %v674
        %v803 = vpop.f32.mrf.mxu0
        %v804 = vadd.f32 %v647, %v803
        %v805 = vpop.f32.mrf.mxu0
        %806 = vmatprep.mubr.f32.mxu0 0.0
        %807 = vmatmul.mubr.f32.gmra.mxu0 %v677
        %v808 = vpop.f32.mrf.mxu0
        %v809 = vadd.f32 %v647, %v808
        %v810 = vpop.f32.mrf.mxu0
        %811 = vmatprep.mubr.f32.mxu0 0.0
        %812 = vmatmul.mubr.f32.gmra.mxu0 %v680
        %v813 = vpop.f32.mrf.mxu0
        %v814 = vadd.f32 %v647, %v813
        %v815 = vpop.f32.mrf.mxu0
        %816 = vmatprep.mubr.f32.mxu0 0.0
        %817 = vmatmul.mubr.f32.gmra.mxu0 %v683
        %v818 = vpop.f32.mrf.mxu0
        %v819 = vadd.f32 %v647, %v818
        %v820 = vpop.f32.mrf.mxu0
        %821 = vmatprep.mubr.f32.mxu0 0.0
        %822 = vmatmul.mubr.f32.gmra.mxu0 %v686
        %v823 = vpop.f32.mrf.mxu0
        %v824 = vadd.f32 %v647, %v823
        %v825 = vpop.f32.mrf.mxu0
        %826 = vmatprep.mubr.f32.mxu0 0.0
        %827 = vmatmul.mubr.f32.gmra.mxu0 %v689
        %v828 = vpop.f32.mrf.mxu0
        %v829 = vadd.f32 %v647, %v828
        %v830 = vpop.f32.mrf.mxu0
        %831 = vmatprep.mubr.f32.mxu0 0.0
        %832 = vmatmul.mubr.f32.gmra.mxu0 %v692
        %v833 = vpop.f32.mrf.mxu0
        %v834 = vadd.f32 %v647, %v833
        %v835 = vpop.f32.mrf.mxu0
        %836 = vmatprep.mubr.f32.mxu0 0.0
        %837 = vmatmul.mubr.f32.gmra.mxu0 %v695
        %v838 = vpop.f32.mrf.mxu0
        %v839 = vadd.f32 %v647, %v838
        %v840 = vpop.f32.mrf.mxu0
        %841 = vdwg.mxu0
        %v842 = vmax.f32 %v764, 0.0
        %v843 = vmax.f32 %v769, 0.0
        %v844 = vmax.f32 %v774, 0.0
        %v845 = vmax.f32 %v779, 0.0
        %v846 = vmax.f32 %v784, 0.0
        %v847 = vmax.f32 %v789, 0.0
        %v848 = vmax.f32 %v794, 0.0
        %v849 = vmax.f32 %v799, 0.0
        %v850 = vmax.f32 %v804, 0.0
        %v851 = vmax.f32 %v809, 0.0
        %v852 = vmax.f32 %v814, 0.0
        %v853 = vmax.f32 %v819, 0.0
        %v854 = vmax.f32 %v824, 0.0
        %v855 = vmax.f32 %v829, 0.0
        %v856 = vmax.f32 %v834, 0.0
        %v857 = vmax.f32 %v839, 0.0
        %v858 = vld [vmem:[#allocation2] sm:$0x1]
        %v859 = vld [vmem:[%s6] sm:$0x1]
        %861 = vset.pattern.permute.xlu0 0
        %862 = vperm.xlu0 %861, %v858
        %v863 = vpop.permute.xlu0 %862
        %v865 = vlaneseq
        %v866 = vshrl.u32 %v865, 7
        %v867 = vsub.s32 0, %v866
        %v868 = vrot.slane %v863, %v867
        %v870 = vsel %vm428, %v859, 0
        %v873 = vsel %vm428, %v842, 0
        %v876 = vsel %vm428, %v843, 0
        %v879 = vsel %vm428, %v844, 0
        %v882 = vsel %vm428, %v845, 0
        %v885 = vsel %vm428, %v846, 0
        %v888 = vsel %vm428, %v847, 0
        %v891 = vsel %vm428, %v848, 0
        %v894 = vsel %vm428, %v849, 0
        %v897 = vsel %vm428, %v850, 0
        %v900 = vsel %vm428, %v851, 0
        %v903 = vsel %vm428, %v852, 0
        %v906 = vsel %vm428, %v853, 0
        %v909 = vsel %vm428, %v854, 0
        %v912 = vsel %vm428, %v855, 0
        %v915 = vsel %vm428, %v856, 0
        %v918 = vsel %vm428, %v857, 0
        %920 = vmatprep.subr.mxu0 0.0
        %921 = vmatpush1.xpose.msra.mxu0 %v918
        %922 = vmatprep.subr.mxu0 0.0
        %923 = vmatpush1.xpose.msra.mxu0 %v915
        %924 = vmatprep.subr.mxu0 0.0
        %925 = vmatpush1.xpose.msra.mxu0 %v912
        %926 = vmatprep.subr.mxu0 0.0
        %927 = vmatpush1.xpose.msra.mxu0 %v909
        %928 = vmatprep.subr.mxu0 0.0
        %929 = vmatpush1.xpose.msra.mxu0 %v906
        %930 = vmatprep.subr.mxu0 0.0
        %931 = vmatpush1.xpose.msra.mxu0 %v903
        %932 = vmatprep.subr.mxu0 0.0
        %933 = vmatpush1.xpose.msra.mxu0 %v900
        %934 = vmatprep.subr.mxu0 0.0
        %935 = vmatpush1.xpose.msra.mxu0 %v897
        %936 = vmatprep.subr.mxu0 0.0
        %937 = vmatpush1.xpose.msra.mxu0 %v894
        %938 = vmatprep.subr.mxu0 0.0
        %939 = vmatpush1.xpose.msra.mxu0 %v891
        %940 = vmatprep.subr.mxu0 0.0
        %941 = vmatpush1.xpose.msra.mxu0 %v888
        %942 = vmatprep.subr.mxu0 0.0
        %943 = vmatpush1.xpose.msra.mxu0 %v885
        %944 = vmatprep.subr.mxu0 0.0
        %945 = vmatpush1.xpose.msra.mxu0 %v882
        %946 = vmatprep.subr.mxu0 0.0
        %947 = vmatpush1.xpose.msra.mxu0 %v879
        %948 = vmatprep.subr.mxu0 0.0
        %949 = vmatpush1.xpose.msra.mxu0 %v876
        %950 = vmatprep.subr.mxu0 0.0
        %951 = vmatpush1.xpose.msra.mxu0 %v873
        %952 = vmatprep.subr.mxu0 0.0
        %953 = vmatpush2.xpose.msra.mxu0 0.0
        %954 = vmatprep.subr.mxu0 0.0
        %955 = vmatpush2.xpose.msra.mxu0 0.0
        %956 = vmatprep.subr.mxu0 0.0
        %957 = vmatpush2.xpose.msra.mxu0 0.0
        %958 = vmatprep.subr.mxu0 0.0
        %959 = vmatpush2.xpose.msra.mxu0 0.0
        %960 = vmatprep.subr.mxu0 0.0
        %961 = vmatpush2.xpose.msra.mxu0 0.0
        %962 = vmatprep.subr.mxu0 0.0
        %963 = vmatpush2.xpose.msra.mxu0 0.0
        %964 = vmatprep.subr.mxu0 0.0
        %965 = vmatpush2.xpose.msra.mxu0 0.0
        %966 = vmatprep.subr.mxu0 0.0
        %967 = vmatpush2.xpose.msra.mxu0 0.0
        %968 = vmatprep.subr.mxu0 0.0
        %969 = vmatpush2.xpose.msra.mxu0 0.0
        %970 = vmatprep.subr.mxu0 0.0
        %971 = vmatpush2.xpose.msra.mxu0 0.0
        %972 = vmatprep.subr.mxu0 0.0
        %973 = vmatpush2.xpose.msra.mxu0 0.0
        %974 = vmatprep.subr.mxu0 0.0
        %975 = vmatpush2.xpose.msra.mxu0 0.0
        %976 = vmatprep.subr.mxu0 0.0
        %977 = vmatpush2.xpose.msra.mxu0 0.0
        %978 = vmatprep.subr.mxu0 0.0
        %979 = vmatpush2.xpose.msra.mxu0 0.0
        %980 = vmatprep.subr.mxu0 0.0
        %981 = vmatpush2.xpose.msra.mxu0 0.0
        %982 = vmatprep.subr.mxu0 0.0
        %983 = vmatpush2.xpose.msra.mxu0 0.0
        %984 = vmatprep.mubr.f32.mxu0 0.0
        %985 = vmatmul.mubr.f32.gmra.mxu0 %v870
        %v986 = vpop.f32.mrf.mxu0
        %v987 = vadd.f32 %v868, %v986
        %v988 = vpop.f32.mrf.mxu0
        %989 = vdwg.mxu0
        %v990 = vxor.u32 %v987, 2147483648
        %v991 = vmul.f32 %v990, 1.442695
        %v992 = vpow.pop %v991
        %v993 = vadd.f32 %v992, 1.0
        %v994 = vrcp.pop %v993
        %v995 = vmul.f32 1.0, %v994
        %996 = vst [vmem:[%s340] sm:$0x1] %v995
        %s997 = sand.u32 %s210, 1
        %s998 = scalar_lea.sflag [#allocation4], %s997
        %s999 = sand.u32 %s210, 1
        %s1000 = scalar_lea.vmem [#allocation3], %s999
        // Predicated region
        $region53: #{tpu_custom_call.1} parent=51 // pred_check
          %p1001 = pneg %p220
        $region54: #{tpu_custom_call.1} parent=51 // pred_check_branch
          %1003 = sbr.rel (%p1001) target = $region56
        $region55: #{tpu_custom_call.1} parent=51 // pred_region
          %s1005 = ssub.s32 16, 16
          %1006 = vsyncadd %s998, %s1005
          %s1007 = smul.addr %s24, 16
          %s1008 = scalar_lea.hbm %s8, %s1007
          %s1010 = sshll.u32 %s1000, 4
          %s1011 = int_to_ptr.vmem [resolvable:$true] %s1010
          %1013 = dma.vmem_to_hbm [thread:$0]  %s1011, 16, %s1008, %s998
        $region56: #{tpu_custom_call.1} parent=51 // pred_fallthru
          _
      $region52: #{tpu_custom_call.1} parent=5 // pred_fallthru
        _
      %p1014 = scmp.le.s32.totalorder 2, %s19
      // Predicated region
      $region57: #{tpu_custom_call.1} parent=5 // pred_check
        %p1015 = pneg %p1014
      $region58: #{tpu_custom_call.1} parent=5 // pred_check_branch
        %1017 = sbr.rel (%p1015) target = $region60
      $region59: #{tpu_custom_call.1} parent=5 // pred_region
        %s1018 = ssub.s32 %s19, 2
        // Predicated region
        $region61: #{tpu_custom_call.1} parent=59 // pred_check
          %p1019 = pneg %p226
        $region62: #{tpu_custom_call.1} parent=59 // pred_check_branch
          %1021 = sbr.rel (%p1019) target = $region64
        $region63: #{tpu_custom_call.1} parent=59 // pred_region
          %s1022 = sand.u32 %s211, 1
          %s1023 = scalar_lea.sflag [#allocation4], %s1022
          %s1024 = sand.u32 %s211, 1
          %s1025 = scalar_lea.vmem [#allocation3], %s1024
          %1026 = dma.done %s1023, 16
        $region64: #{tpu_custom_call.1} parent=59 // pred_fallthru
          _
      $region60: #{tpu_custom_call.1} parent=5 // pred_fallthru
        _
    $region6: #{tpu_custom_call.1} parent=1 // loop_footer
      %s23 = sadd.s32 1, %s19
    $region7: #{tpu_custom_call.1} parent=1 // loop_footer_branch
      %18 = sbr.rel target = $region3
    $region8: #{tpu_custom_call.1} parent=1 // loop_exit
      _
    %1027 = vsyncpa [#allocation4], 1
    %s1028 = scalar_lea.sflag [#allocation4], 1
    %1029 = vsyncpa %s1028, 1

</llo_original>
